<compile_context>
chip_gen: v6e
topology: v6e:2x2x1
jax: 0.10.0
libtpu: 0.0.40
codegen_flags: <defaults>
</compile_context>

<pallas_src>
import jax
import jax.numpy as jnp
from jax.experimental import pallas as pl
from jax.experimental.pallas import tpu as pltpu
import numpy as np


# ---------------------------------------------------------------------------
# Pallas kernel: the entire MetaActor forward for one batch tile
# ---------------------------------------------------------------------------
def meta_actor_kernel(
    feat_ref, hist_ref,
    wf_ref,            # (128, 256) bf16 = [w1f | w5f]   (feat -> layer1 / combined1)
    w1h_ref, b1_ref,   # (8, 128) bf16, (1, 128) f32
    w2_ref, b2_ref,    # (128, 128) bf16, (1, 128) f32
    wfb_ref,           # (128, 256) bf16 = [w3 | w5b]    (feat_bot -> bot2 / combined1)
    b3_ref,            # (1, 128) f32
    w4_ref, b4_ref,    # (128, 128) bf16 (zero-padded cols), (1, 128) f32
    b5_ref,            # (1, 128) f32
    w6_ref, b6_ref,    # (128, 128) bf16, (1, 128) f32
    w7_ref, b7_ref,    # (128, 128) bf16 (zero-padded cols), (1, 128) f32
    act_ref, mu_ref,   # (TILE_B, 128) f32 each (lane-dense, sliced in wrapper)
):
    f32 = jnp.float32
    bf16 = jnp.bfloat16

    feat = feat_ref[...]   # (TB, 128) bf16
    hist = hist_ref[...]   # (TB, 8)   bf16

    # --- fused feat projection: [feat@w1f | feat@w5f] in one 256-wide MXU pass
    feat_proj = jnp.dot(feat, wf_ref[...], preferred_element_type=f32)  # (TB, 256)
    ff1 = feat_proj[:, :128]
    ff5 = feat_proj[:, 128:]

    # --- network_bot_1: cat(feat, hist) @ W1 == feat@W1_f + hist@W1_h
    h = jnp.tanh(
        ff1 + jnp.dot(hist, w1h_ref[...], preferred_element_type=f32) + b1_ref[...]
    )
    feat_bot = jnp.tanh(
        jnp.dot(h.astype(bf16), w2_ref[...], preferred_element_type=f32) + b2_ref[...]
    )
    fb_bf = feat_bot.astype(bf16)

    # --- fused feat_bot projection: [feat_bot@w3 | feat_bot@w5b]
    fb_proj = jnp.dot(fb_bf, wfb_ref[...], preferred_element_type=f32)  # (TB, 256)

    # --- network_bot_2 -> mu_hat (padded to 128 lanes)
    g = jnp.tanh(fb_proj[:, :128] + b3_ref[...])
    mu_ref[...] = (
        jnp.dot(g.astype(bf16), w4_ref[...], preferred_element_type=f32) + b4_ref[...]
    ).astype(mu_ref.dtype)

    # --- network_combined on cat(feat, feat_bot.detach())
    c = jnp.tanh(ff5 + fb_proj[:, 128:] + b5_ref[...])
    c = jnp.tanh(
        jnp.dot(c.astype(bf16), w6_ref[...], preferred_element_type=f32) + b6_ref[...]
    )
    act_ref[...] = (
        jnp.dot(c.astype(bf16), w7_ref[...], preferred_element_type=f32) + b7_ref[...]
    ).astype(act_ref.dtype)


# ---------------------------------------------------------------------------
# Parameter construction (deterministic, mimics layer_init: orthogonal W, 0 bias)
# ---------------------------------------------------------------------------
def _make_linear(key, in_f, out_f, std):
    # torch stores weight as (out, in); we directly build (in, out) = W.T.
    w = jax.nn.initializers.orthogonal(scale=std)(key, (in_f, out_f), jnp.float32)
    b = jnp.zeros((1, out_f), jnp.float32)
    return w, b


def make_meta_actor_params(key, action_space_size, domain_randomization_size,
                           nframes=5, feat_dim=128):
    hist_dim = (nframes - 1) * 2  # == 8
    keys = jax.random.split(key, 7)
    std = float(np.sqrt(2.0))

    w1, b1 = _make_linear(keys[0], hist_dim + feat_dim, 128, std)   # Linear(136,128)
    w2, b2 = _make_linear(keys[1], 128, 128, std)
    w3, b3 = _make_linear(keys[2], 128, 128, std)
    w4, b4 = _make_linear(keys[3], 128, domain_randomization_size, std)
    w5, b5 = _make_linear(keys[4], feat_dim + 128, 128, std)         # Linear(256,128)
    w6, b6 = _make_linear(keys[5], 128, 128, std)
    w7, b7 = _make_linear(keys[6], 128, action_space_size, 0.01)

    # split concatenated-input weights (avoids in-kernel concat)
    w1f, w1h = w1[:feat_dim], w1[feat_dim:]      # (128,128), (8,128)
    w5f, w5b = w5[:feat_dim], w5[feat_dim:]      # (128,128), (128,128)

    return dict(w1f=w1f, w1h=w1h, b1=b1, w2=w2, b2=b2,
                w3=w3, b3=b3, w4=w4, b4=b4,
                w5f=w5f, w5b=w5b, b5=b5, w6=w6, b6=b6, w7=w7, b7=b7)


def pack_kernel_params(params):
    """Kernel-layout params: bf16 weights, horizontally fused, lane-padded heads."""
    bf16 = jnp.bfloat16
    f32 = jnp.float32
    dr_size = params["w4"].shape[1]
    act_size = params["w7"].shape[1]

    wf = jnp.concatenate([params["w1f"], params["w5f"]], axis=1).astype(bf16)   # (128,256)
    wfb = jnp.concatenate([params["w3"], params["w5b"]], axis=1).astype(bf16)   # (128,256)

    w4p = jnp.zeros((128, 128), f32).at[:, :dr_size].set(params["w4"]).astype(bf16)
    b4p = jnp.zeros((1, 128), f32).at[:, :dr_size].set(params["b4"])
    w7p = jnp.zeros((128, 128), f32).at[:, :act_size].set(params["w7"]).astype(bf16)
    b7p = jnp.zeros((1, 128), f32).at[:, :act_size].set(params["b7"])

    return dict(
        wf=wf,
        w1h=params["w1h"].astype(bf16), b1=params["b1"].astype(f32),
        w2=params["w2"].astype(bf16), b2=params["b2"].astype(f32),
        wfb=wfb, b3=params["b3"].astype(f32),
        w4p=w4p, b4p=b4p,
        b5=params["b5"].astype(f32),
        w6=params["w6"].astype(bf16), b6=params["b6"].astype(f32),
        w7p=w7p, b7p=b7p,
        dr_size=dr_size, act_size=act_size,
    )


# ---------------------------------------------------------------------------
# Wrapper: batch-gridded pallas_call with resident weights
# ---------------------------------------------------------------------------
def _round_up(x, m):
    return ((x + m - 1) // m) * m


def meta_actor_forward(kparams, feat, history_action, *, tile_b=256):
    B = feat.shape[0]
    feat = feat.astype(jnp.bfloat16)
    hist = history_action.reshape((-1, 8)).astype(jnp.bfloat16)

    # Batch tiling: TILE_B multiple of 8, batch zero-padded to a multiple of TILE_B.
    TILE_B = max(8, _round_up(min(tile_b, _round_up(B, 8)), 8))
    padded_B = _round_up(B, TILE_B)
    if padded_B != B:
        feat = jnp.pad(feat, ((0, padded_B - B), (0, 0)))
        hist = jnp.pad(hist, ((0, padded_B - B), (0, 0)))
    grid = (pl.cdiv(padded_B, TILE_B),)

    weight_args = [
        kparams["wf"],
        kparams["w1h"], kparams["b1"],
        kparams["w2"], kparams["b2"],
        kparams["wfb"], kparams["b3"],
        kparams["w4p"], kparams["b4p"],
        kparams["b5"],
        kparams["w6"], kparams["b6"],
        kparams["w7p"], kparams["b7p"],
    ]

    def resident_spec(arr):
        # constant index_map -> block never changes -> weight stays resident in VMEM
        return pl.BlockSpec(arr.shape, lambda i, n=arr.ndim: (0,) * n)

    in_specs = [
        pl.BlockSpec((TILE_B, 128), lambda i: (i, 0)),   # feat
        pl.BlockSpec((TILE_B, 8), lambda i: (i, 0)),     # hist
    ] + [resident_spec(w) for w in weight_args]

    out_specs = (
        pl.BlockSpec((TILE_B, 128), lambda i: (i, 0)),   # act (lane-dense padded)
        pl.BlockSpec((TILE_B, 128), lambda i: (i, 0)),   # mu  (lane-dense padded)
    )
    out_shape = (
        jax.ShapeDtypeStruct((padded_B, 128), jnp.float32),
        jax.ShapeDtypeStruct((padded_B, 128), jnp.float32),
    )

    act_pad, mu_pad = pl.pallas_call(
        meta_actor_kernel,
        grid=grid,
        out_shape=out_shape,
        in_specs=in_specs,
        out_specs=out_specs,
        compiler_params=pltpu.CompilerParams(
            dimension_semantics=("parallel",),
            vmem_limit_bytes=32 * 1024 * 1024,
        ),
    )(feat, hist, *weight_args)

    act = act_pad[:B, : kparams["act_size"]]
    mu_hat = mu_pad[:B, : kparams["dr_size"]]
    return act, mu_hat


# ---------------------------------------------------------------------------
# Pure-JAX reference (same bf16 matmul inputs / f32 accumulation as the kernel)
# ---------------------------------------------------------------------------
def meta_actor_ref(params, feat, history_action):
    bf16, f32 = jnp.bfloat16, jnp.float32

    def mm(x, w):
        return jnp.dot(x.astype(bf16), w.astype(bf16), preferred_element_type=f32)

    hist = history_action.reshape((-1, 8))
    h = jnp.tanh(mm(feat, params["w1f"]) + mm(hist, params["w1h"]) + params["b1"])
    feat_bot = jnp.tanh(mm(h, params["w2"]) + params["b2"])
    g = jnp.tanh(mm(feat_bot, params["w3"]) + params["b3"])
    mu_hat = mm(g, params["w4"]) + params["b4"]
    c = jnp.tanh(mm(feat, params["w5f"]) + mm(feat_bot, params["w5b"]) + params["b5"])
    c = jnp.tanh(mm(c, params["w6"]) + params["b6"])
    act = mm(c, params["w7"]) + params["b7"]
    return act, mu_hat


if __name__ == "__main__":
    key = jax.random.PRNGKey(0)
    k_param, k_feat, k_hist = jax.random.split(key, 3)

    nframes = 5                       # (nframes - 1) * 2 == 8 history features
    action_space_size = 6
    domain_randomization_size = 5

    params = make_meta_actor_params(
        k_param, action_space_size, domain_randomization_size, nframes=nframes
    )
    kparams = pack_kernel_params(params)

    # --- small single-tile case ---
    B = 8
    feat = jax.random.normal(k_feat, (B, 128), jnp.float32)
    history_action = jax.random.normal(k_hist, (B, nframes - 1, 2), jnp.float32)

    act, mu_hat = meta_actor_forward(kparams, feat, history_action)
    jax.block_until_ready((act, mu_hat))

    act_ref, mu_ref = meta_actor_ref(params, feat, history_action)
    assert act.shape == (B, action_space_size)
    assert mu_hat.shape == (B, domain_randomization_size)
    np.testing.assert_allclose(np.asarray(act), np.asarray(act_ref), rtol=2e-2, atol=2e-2)
    np.testing.assert_allclose(np.asarray(mu_hat), np.asarray(mu_ref), rtol=2e-2, atol=2e-2)

    # --- multi-tile case (exercises the batch grid + padding tail) ---
    B2 = 260
    feat2 = jax.random.normal(jax.random.PRNGKey(1), (B2, 128), jnp.float32)
    hist2 = jax.random.normal(jax.random.PRNGKey(2), (B2, nframes - 1, 2), jnp.float32)
    act2, mu2 = meta_actor_forward(kparams, feat2, hist2, tile_b=128)
    jax.block_until_ready((act2, mu2))
    act2_ref, mu2_ref = meta_actor_ref(params, feat2, hist2)
    np.testing.assert_allclose(np.asarray(act2), np.asarray(act2_ref), rtol=2e-2, atol=2e-2)
    np.testing.assert_allclose(np.asarray(mu2), np.asarray(mu2_ref), rtol=2e-2, atol=2e-2)

    print("KERNEL_OK")
</pallas_src>

<mosaic_0001>
module attributes {stable_mosaic.version = 11 : i64} {
  func.func @meta_actor_kernel(%arg0: i32, %arg1: memref<8x128xbf16, #tpu.memory_space<vmem>>, %arg2: memref<8x8xbf16, #tpu.memory_space<vmem>>, %arg3: memref<128x256xbf16, #tpu.memory_space<vmem>>, %arg4: memref<8x128xbf16, #tpu.memory_space<vmem>>, %arg5: memref<1x128xf32, #tpu.memory_space<vmem>>, %arg6: memref<128x128xbf16, #tpu.memory_space<vmem>>, %arg7: memref<1x128xf32, #tpu.memory_space<vmem>>, %arg8: memref<128x256xbf16, #tpu.memory_space<vmem>>, %arg9: memref<1x128xf32, #tpu.memory_space<vmem>>, %arg10: memref<128x128xbf16, #tpu.memory_space<vmem>>, %arg11: memref<1x128xf32, #tpu.memory_space<vmem>>, %arg12: memref<1x128xf32, #tpu.memory_space<vmem>>, %arg13: memref<128x128xbf16, #tpu.memory_space<vmem>>, %arg14: memref<1x128xf32, #tpu.memory_space<vmem>>, %arg15: memref<128x128xbf16, #tpu.memory_space<vmem>>, %arg16: memref<1x128xf32, #tpu.memory_space<vmem>>, %arg17: memref<8x128xf32, #tpu.memory_space<vmem>>, %arg18: memref<8x128xf32, #tpu.memory_space<vmem>>) attributes {dimension_semantics = [#tpu.dimension_semantics<parallel>], iteration_bounds = array<i64: 1>, scalar_prefetch = 0 : i64, scratch_operands = 0 : i64, tpu.core_type = #tpu.core_type<tc>, window_params = [{transform_indices = @transform_0, window_bounds = array<i64: 8, 128>}, {transform_indices = @transform_1, window_bounds = array<i64: 8, 8>}, {pipeline_mode = #tpu.pipeline_mode<synchronous>, transform_indices = @transform_2, window_bounds = array<i64: 128, 256>}, {pipeline_mode = #tpu.pipeline_mode<synchronous>, transform_indices = @transform_3, window_bounds = array<i64: 8, 128>}, {pipeline_mode = #tpu.pipeline_mode<synchronous>, transform_indices = @transform_4, window_bounds = array<i64: 1, 128>}, {pipeline_mode = #tpu.pipeline_mode<synchronous>, transform_indices = @transform_5, window_bounds = array<i64: 128, 128>}, {pipeline_mode = #tpu.pipeline_mode<synchronous>, transform_indices = @transform_6, window_bounds = array<i64: 1, 128>}, {pipeline_mode = #tpu.pipeline_mode<synchronous>, transform_indices = @transform_7, window_bounds = array<i64: 128, 256>}, {pipeline_mode = #tpu.pipeline_mode<synchronous>, transform_indices = @transform_8, window_bounds = array<i64: 1, 128>}, {pipeline_mode = #tpu.pipeline_mode<synchronous>, transform_indices = @transform_9, window_bounds = array<i64: 128, 128>}, {pipeline_mode = #tpu.pipeline_mode<synchronous>, transform_indices = @transform_10, window_bounds = array<i64: 1, 128>}, {pipeline_mode = #tpu.pipeline_mode<synchronous>, transform_indices = @transform_11, window_bounds = array<i64: 1, 128>}, {pipeline_mode = #tpu.pipeline_mode<synchronous>, transform_indices = @transform_12, window_bounds = array<i64: 128, 128>}, {pipeline_mode = #tpu.pipeline_mode<synchronous>, transform_indices = @transform_13, window_bounds = array<i64: 1, 128>}, {pipeline_mode = #tpu.pipeline_mode<synchronous>, transform_indices = @transform_14, window_bounds = array<i64: 128, 128>}, {pipeline_mode = #tpu.pipeline_mode<synchronous>, transform_indices = @transform_15, window_bounds = array<i64: 1, 128>}, {transform_indices = @transform_16, window_bounds = array<i64: 8, 128>}, {transform_indices = @transform_17, window_bounds = array<i64: 8, 128>}]} {
    %c0 = arith.constant 0 : index
    %c0_0 = arith.constant 0 : index
    %0 = vector.load %arg1[%c0, %c0_0] : memref<8x128xbf16, #tpu.memory_space<vmem>>, vector<8x128xbf16>
    %c0_1 = arith.constant 0 : index
    %c0_2 = arith.constant 0 : index
    %1 = vector.load %arg2[%c0_1, %c0_2] : memref<8x8xbf16, #tpu.memory_space<vmem>>, vector<8x8xbf16>
    %c0_3 = arith.constant 0 : index
    %c0_4 = arith.constant 0 : index
    %2 = vector.load %arg3[%c0_3, %c0_4] : memref<128x256xbf16, #tpu.memory_space<vmem>>, vector<128x256xbf16>
    %cst = arith.constant dense<0.000000e+00> : vector<8x256xf32>
    %3 = tpu.matmul %0, %2, %cst {dimension_numbers = #tpu.dot_dimension_numbers<[1], [0], [0], [1], [0, 0, 1, 1], [], []>} : vector<8x128xbf16>, vector<128x256xbf16>, vector<8x256xf32> -> vector<8x256xf32>
    %4 = vector.extract_strided_slice %3 {offsets = [0, 0], sizes = [8, 128], strides = [1, 1]} : vector<8x256xf32> to vector<8x128xf32>
    %5 = vector.extract_strided_slice %3 {offsets = [0, 128], sizes = [8, 128], strides = [1, 1]} : vector<8x256xf32> to vector<8x128xf32>
    %c0_5 = arith.constant 0 : index
    %c0_6 = arith.constant 0 : index
    %6 = vector.load %arg4[%c0_5, %c0_6] : memref<8x128xbf16, #tpu.memory_space<vmem>>, vector<8x128xbf16>
    %cst_7 = arith.constant dense<0.000000e+00> : vector<8x128xf32>
    %7 = tpu.matmul %1, %6, %cst_7 {dimension_numbers = #tpu.dot_dimension_numbers<[1], [0], [0], [1], [0, 0, 1, 1], [], []>} : vector<8x8xbf16>, vector<8x128xbf16>, vector<8x128xf32> -> vector<8x128xf32>
    %8 = arith.addf %4, %7 : vector<8x128xf32>
    %c0_8 = arith.constant 0 : index
    %c0_9 = arith.constant 0 : index
    %9 = vector.load %arg5[%c0_8, %c0_9] : memref<1x128xf32, #tpu.memory_space<vmem>>, vector<1x128xf32>
    %10 = vector.broadcast %9 : vector<1x128xf32> to vector<8x128xf32>
    %11 = arith.addf %8, %10 : vector<8x128xf32>
    %12 = math.tanh %11 : vector<8x128xf32>
    %13 = arith.truncf %12 : vector<8x128xf32> to vector<8x128xbf16>
    %c0_10 = arith.constant 0 : index
    %c0_11 = arith.constant 0 : index
    %14 = vector.load %arg6[%c0_10, %c0_11] : memref<128x128xbf16, #tpu.memory_space<vmem>>, vector<128x128xbf16>
    %cst_12 = arith.constant dense<0.000000e+00> : vector<8x128xf32>
    %15 = tpu.matmul %13, %14, %cst_12 {dimension_numbers = #tpu.dot_dimension_numbers<[1], [0], [0], [1], [0, 0, 1, 1], [], []>} : vector<8x128xbf16>, vector<128x128xbf16>, vector<8x128xf32> -> vector<8x128xf32>
    %c0_13 = arith.constant 0 : index
    %c0_14 = arith.constant 0 : index
    %16 = vector.load %arg7[%c0_13, %c0_14] : memref<1x128xf32, #tpu.memory_space<vmem>>, vector<1x128xf32>
    %17 = vector.broadcast %16 : vector<1x128xf32> to vector<8x128xf32>
    %18 = arith.addf %15, %17 : vector<8x128xf32>
    %19 = math.tanh %18 : vector<8x128xf32>
    %20 = arith.truncf %19 : vector<8x128xf32> to vector<8x128xbf16>
    %c0_15 = arith.constant 0 : index
    %c0_16 = arith.constant 0 : index
    %21 = vector.load %arg8[%c0_15, %c0_16] : memref<128x256xbf16, #tpu.memory_space<vmem>>, vector<128x256xbf16>
    %cst_17 = arith.constant dense<0.000000e+00> : vector<8x256xf32>
    %22 = tpu.matmul %20, %21, %cst_17 {dimension_numbers = #tpu.dot_dimension_numbers<[1], [0], [0], [1], [0, 0, 1, 1], [], []>} : vector<8x128xbf16>, vector<128x256xbf16>, vector<8x256xf32> -> vector<8x256xf32>
    %23 = vector.extract_strided_slice %22 {offsets = [0, 0], sizes = [8, 128], strides = [1, 1]} : vector<8x256xf32> to vector<8x128xf32>
    %c0_18 = arith.constant 0 : index
    %c0_19 = arith.constant 0 : index
    %24 = vector.load %arg9[%c0_18, %c0_19] : memref<1x128xf32, #tpu.memory_space<vmem>>, vector<1x128xf32>
    %25 = vector.broadcast %24 : vector<1x128xf32> to vector<8x128xf32>
    %26 = arith.addf %23, %25 : vector<8x128xf32>
    %27 = math.tanh %26 : vector<8x128xf32>
    %28 = arith.truncf %27 : vector<8x128xf32> to vector<8x128xbf16>
    %c0_20 = arith.constant 0 : index
    %c0_21 = arith.constant 0 : index
    %29 = vector.load %arg10[%c0_20, %c0_21] : memref<128x128xbf16, #tpu.memory_space<vmem>>, vector<128x128xbf16>
    %cst_22 = arith.constant dense<0.000000e+00> : vector<8x128xf32>
    %30 = tpu.matmul %28, %29, %cst_22 {dimension_numbers = #tpu.dot_dimension_numbers<[1], [0], [0], [1], [0, 0, 1, 1], [], []>} : vector<8x128xbf16>, vector<128x128xbf16>, vector<8x128xf32> -> vector<8x128xf32>
    %c0_23 = arith.constant 0 : index
    %c0_24 = arith.constant 0 : index
    %31 = vector.load %arg11[%c0_23, %c0_24] : memref<1x128xf32, #tpu.memory_space<vmem>>, vector<1x128xf32>
    %32 = vector.broadcast %31 : vector<1x128xf32> to vector<8x128xf32>
    %33 = arith.addf %30, %32 : vector<8x128xf32>
    %c0_25 = arith.constant 0 : index
    %c0_26 = arith.constant 0 : index
    %34 = vector.load %arg18[%c0_25, %c0_26] : memref<8x128xf32, #tpu.memory_space<vmem>>, vector<8x128xf32>
    tpu.vector_store %arg18[%c0_25, %c0_26], %33 {strides = array<i32>} : memref<8x128xf32, #tpu.memory_space<vmem>>, vector<8x128xf32>,
    %35 = vector.extract_strided_slice %22 {offsets = [0, 128], sizes = [8, 128], strides = [1, 1]} : vector<8x256xf32> to vector<8x128xf32>
    %36 = arith.addf %5, %35 : vector<8x128xf32>
    %c0_27 = arith.constant 0 : index
    %c0_28 = arith.constant 0 : index
    %37 = vector.load %arg12[%c0_27, %c0_28] : memref<1x128xf32, #tpu.memory_space<vmem>>, vector<1x128xf32>
    %38 = vector.broadcast %37 : vector<1x128xf32> to vector<8x128xf32>
    %39 = arith.addf %36, %38 : vector<8x128xf32>
    %40 = math.tanh %39 : vector<8x128xf32>
    %41 = arith.truncf %40 : vector<8x128xf32> to vector<8x128xbf16>
    %c0_29 = arith.constant 0 : index
    %c0_30 = arith.constant 0 : index
    %42 = vector.load %arg13[%c0_29, %c0_30] : memref<128x128xbf16, #tpu.memory_space<vmem>>, vector<128x128xbf16>
    %cst_31 = arith.constant dense<0.000000e+00> : vector<8x128xf32>
    %43 = tpu.matmul %41, %42, %cst_31 {dimension_numbers = #tpu.dot_dimension_numbers<[1], [0], [0], [1], [0, 0, 1, 1], [], []>} : vector<8x128xbf16>, vector<128x128xbf16>, vector<8x128xf32> -> vector<8x128xf32>
    %c0_32 = arith.constant 0 : index
    %c0_33 = arith.constant 0 : index
    %44 = vector.load %arg14[%c0_32, %c0_33] : memref<1x128xf32, #tpu.memory_space<vmem>>, vector<1x128xf32>
    %45 = vector.broadcast %44 : vector<1x128xf32> to vector<8x128xf32>
    %46 = arith.addf %43, %45 : vector<8x128xf32>
    %47 = math.tanh %46 : vector<8x128xf32>
    %48 = arith.truncf %47 : vector<8x128xf32> to vector<8x128xbf16>
    %c0_34 = arith.constant 0 : index
    %c0_35 = arith.constant 0 : index
    %49 = vector.load %arg15[%c0_34, %c0_35] : memref<128x128xbf16, #tpu.memory_space<vmem>>, vector<128x128xbf16>
    %cst_36 = arith.constant dense<0.000000e+00> : vector<8x128xf32>
    %50 = tpu.matmul %48, %49, %cst_36 {dimension_numbers = #tpu.dot_dimension_numbers<[1], [0], [0], [1], [0, 0, 1, 1], [], []>} : vector<8x128xbf16>, vector<128x128xbf16>, vector<8x128xf32> -> vector<8x128xf32>
    %c0_37 = arith.constant 0 : index
    %c0_38 = arith.constant 0 : index
    %51 = vector.load %arg16[%c0_37, %c0_38] : memref<1x128xf32, #tpu.memory_space<vmem>>, vector<1x128xf32>
    %52 = vector.broadcast %51 : vector<1x128xf32> to vector<8x128xf32>
    %53 = arith.addf %50, %52 : vector<8x128xf32>
    %c0_39 = arith.constant 0 : index
    %c0_40 = arith.constant 0 : index
    %54 = vector.load %arg17[%c0_39, %c0_40] : memref<8x128xf32, #tpu.memory_space<vmem>>, vector<8x128xf32>
    tpu.vector_store %arg17[%c0_39, %c0_40], %53 {strides = array<i32>} : memref<8x128xf32, #tpu.memory_space<vmem>>, vector<8x128xf32>,
    return
  }
  func.func @transform_0(%arg0: i32) -> (i32, i32) {
    %c0_i32 = arith.constant 0 : i32
    %c0_i32_0 = arith.constant 0 : i32
    return %arg0, %c0_i32 : i32, i32
  }
  func.func @transform_1(%arg0: i32) -> (i32, i32) {
    %c0_i32 = arith.constant 0 : i32
    %c0_i32_0 = arith.constant 0 : i32
    return %arg0, %c0_i32 : i32, i32
  }
  func.func @transform_2(%arg0: i32) -> (i32, i32) {
    %c0_i32 = arith.constant 0 : i32
    %c0_i32_0 = arith.constant 0 : i32
    %c0_i32_1 = arith.constant 0 : i32
    return %c0_i32, %c0_i32_0 : i32, i32
  }
  func.func @transform_3(%arg0: i32) -> (i32, i32) {
    %c0_i32 = arith.constant 0 : i32
    %c0_i32_0 = arith.constant 0 : i32
    %c0_i32_1 = arith.constant 0 : i32
    return %c0_i32, %c0_i32_0 : i32, i32
  }
  func.func @transform_4(%arg0: i32) -> (i32, i32) {
    %c0_i32 = arith.constant 0 : i32
    %c0_i32_0 = arith.constant 0 : i32
    %c0_i32_1 = arith.constant 0 : i32
    return %c0_i32, %c0_i32_0 : i32, i32
  }
  func.func @transform_5(%arg0: i32) -> (i32, i32) {
    %c0_i32 = arith.constant 0 : i32
    %c0_i32_0 = arith.constant 0 : i32
    %c0_i32_1 = arith.constant 0 : i32
    return %c0_i32, %c0_i32_0 : i32, i32
  }
  func.func @transform_6(%arg0: i32) -> (i32, i32) {
    %c0_i32 = arith.constant 0 : i32
    %c0_i32_0 = arith.constant 0 : i32
    %c0_i32_1 = arith.constant 0 : i32
    return %c0_i32, %c0_i32_0 : i32, i32
  }
  func.func @transform_7(%arg0: i32) -> (i32, i32) {
    %c0_i32 = arith.constant 0 : i32
    %c0_i32_0 = arith.constant 0 : i32
    %c0_i32_1 = arith.constant 0 : i32
    return %c0_i32, %c0_i32_0 : i32, i32
  }
  func.func @transform_8(%arg0: i32) -> (i32, i32) {
    %c0_i32 = arith.constant 0 : i32
    %c0_i32_0 = arith.constant 0 : i32
    %c0_i32_1 = arith.constant 0 : i32
    return %c0_i32, %c0_i32_0 : i32, i32
  }
  func.func @transform_9(%arg0: i32) -> (i32, i32) {
    %c0_i32 = arith.constant 0 : i32
    %c0_i32_0 = arith.constant 0 : i32
    %c0_i32_1 = arith.constant 0 : i32
    return %c0_i32, %c0_i32_0 : i32, i32
  }
  func.func @transform_10(%arg0: i32) -> (i32, i32) {
    %c0_i32 = arith.constant 0 : i32
    %c0_i32_0 = arith.constant 0 : i32
    %c0_i32_1 = arith.constant 0 : i32
    return %c0_i32, %c0_i32_0 : i32, i32
  }
  func.func @transform_11(%arg0: i32) -> (i32, i32) {
    %c0_i32 = arith.constant 0 : i32
    %c0_i32_0 = arith.constant 0 : i32
    %c0_i32_1 = arith.constant 0 : i32
    return %c0_i32, %c0_i32_0 : i32, i32
  }
  func.func @transform_12(%arg0: i32) -> (i32, i32) {
    %c0_i32 = arith.constant 0 : i32
    %c0_i32_0 = arith.constant 0 : i32
    %c0_i32_1 = arith.constant 0 : i32
    return %c0_i32, %c0_i32_0 : i32, i32
  }
  func.func @transform_13(%arg0: i32) -> (i32, i32) {
    %c0_i32 = arith.constant 0 : i32
    %c0_i32_0 = arith.constant 0 : i32
    %c0_i32_1 = arith.constant 0 : i32
    return %c0_i32, %c0_i32_0 : i32, i32
  }
  func.func @transform_14(%arg0: i32) -> (i32, i32) {
    %c0_i32 = arith.constant 0 : i32
    %c0_i32_0 = arith.constant 0 : i32
    %c0_i32_1 = arith.constant 0 : i32
    return %c0_i32, %c0_i32_0 : i32, i32
  }
  func.func @transform_15(%arg0: i32) -> (i32, i32) {
    %c0_i32 = arith.constant 0 : i32
    %c0_i32_0 = arith.constant 0 : i32
    %c0_i32_1 = arith.constant 0 : i32
    return %c0_i32, %c0_i32_0 : i32, i32
  }
  func.func @transform_16(%arg0: i32) -> (i32, i32) {
    %c0_i32 = arith.constant 0 : i32
    %c0_i32_0 = arith.constant 0 : i32
    return %arg0, %c0_i32 : i32, i32
  }
  func.func @transform_17(%arg0: i32) -> (i32, i32) {
    %c0_i32 = arith.constant 0 : i32
    %c0_i32_0 = arith.constant 0 : i32
    return %arg0, %c0_i32 : i32, i32
  }
}

</mosaic_0001>

<llo_original>
// kernel: tpu_custom_call.1
$region0: #{tpu_custom_call.1}
  #allocation0 [shape = 'u32[]', space=smem, size = 0x4, offset = 0x4, fixed_abs, tag = 'smem constant byte address 0x4 - core index']
  #allocation1 [shape = 'u32[144,128]{1,0:T(1,128)}', space=vmem, size = 0x12000, scoped, tag = 'internal scratch']
  %s0 = inlined_call_operand.hbm [shape: bf16[8,128], index: 0, kind: input, shape index: {}]
  %s1 = inlined_call_operand.hbm [shape: bf16[8,8], index: 1, kind: input, shape index: {}]
  %s2 = inlined_call_operand.hbm [shape: bf16[128,256], index: 2, kind: input, shape index: {}]
  %s3 = inlined_call_operand.vmem [shape: bf16[8,128], index: 3, kind: input, shape index: {}]
  %s4 = inlined_call_operand.vmem [shape: f32[1,128], index: 4, kind: input, shape index: {}]
  %s5 = inlined_call_operand.hbm [shape: bf16[128,128], index: 5, kind: input, shape index: {}]
  %s6 = inlined_call_operand.vmem [shape: f32[1,128], index: 6, kind: input, shape index: {}]
  %s7 = inlined_call_operand.hbm [shape: bf16[128,256], index: 7, kind: input, shape index: {}]
  %s8 = inlined_call_operand.vmem [shape: f32[1,128], index: 8, kind: input, shape index: {}]
  %s9 = inlined_call_operand.hbm [shape: bf16[128,128], index: 9, kind: input, shape index: {}]
  %s10 = inlined_call_operand.vmem [shape: f32[1,128], index: 10, kind: input, shape index: {}]
  %s11 = inlined_call_operand.vmem [shape: f32[1,128], index: 11, kind: input, shape index: {}]
  %s12 = inlined_call_operand.hbm [shape: bf16[128,128], index: 12, kind: input, shape index: {}]
  %s13 = inlined_call_operand.vmem [shape: f32[1,128], index: 13, kind: input, shape index: {}]
  %s14 = inlined_call_operand.hbm [shape: bf16[128,128], index: 14, kind: input, shape index: {}]
  %s15 = inlined_call_operand.vmem [shape: f32[1,128], index: 15, kind: input, shape index: {}]
  %s16 = inlined_call_operand.hbm [shape: f32[8,128], index: 16, kind: output, shape index: {0}]
  %s17 = inlined_call_operand.hbm [shape: f32[8,128], index: 17, kind: output, shape index: {1}]
  %18 = xla_tuple %s16, %s17
  %s19 = sld [smem:[#allocation0]]
  $region114: #{tpu_custom_call.1} parent=0
    _
  %s21 = ssub.s32 1, %s19
  %s22 = scalar_select 0, %s21, %s19
  $region1: #{tpu_custom_call.1} parent=0
    #allocation2 [shape = 'u8[2048]{0}', space=vmem, size = 0x800, scoped, tag = 'input window, operand 0, single buffered']
    #allocation3 [shape = 's32[1]{0}', space=sflag, size = 0x4, scoped, tag = 'scoped memory for tpu_custom_call.1']
    #allocation4 [shape = 's32[1]{0}', space=sflag, size = 0x4, scoped, tag = 'scoped memory for tpu_custom_call.1']
    #allocation5 [shape = 'u8[2048]{0}', space=vmem, size = 0x800, scoped, tag = 'input window, operand 1, single buffered']
    #allocation6 [shape = 's32[1]{0}', space=sflag, size = 0x4, scoped, tag = 'scoped memory for tpu_custom_call.1']
    #allocation7 [shape = 'u8[65536]{0}', space=vmem, size = 0x10000, scoped, tag = 'input window, operand 2, single buffered']
    #allocation8 [shape = 'u8[32768]{0}', space=vmem, size = 0x8000, scoped, tag = 'input window, operand 5, single buffered']
    #allocation9 [shape = 's32[1]{0}', space=sflag, size = 0x4, scoped, tag = 'scoped memory for tpu_custom_call.1']
    #allocation10 [shape = 'u8[65536]{0}', space=vmem, size = 0x10000, scoped, tag = 'input window, operand 7, single buffered']
    #allocation11 [shape = 'u8[32768]{0}', space=vmem, size = 0x8000, scoped, tag = 'input window, operand 9, single buffered']
    #allocation12 [shape = 's32[1]{0}', space=sflag, size = 0x4, scoped, tag = 'scoped memory for tpu_custom_call.1']
    #allocation13 [shape = 'u8[32768]{0}', space=vmem, size = 0x8000, scoped, tag = 'input window, operand 12, single buffered']
    #allocation14 [shape = 'u8[32768]{0}', space=vmem, size = 0x8000, scoped, tag = 'input window, operand 14, single buffered']
    #allocation15 [shape = 's32[1]{0}', space=sflag, size = 0x4, scoped, tag = 'scoped memory for tpu_custom_call.1']
    #allocation16 [shape = 'u8[4096]{0}', space=vmem, size = 0x1000, scoped, tag = 'output window, operand 0, single buffered']
    #allocation17 [shape = 'u8[4096]{0}', space=vmem, size = 0x1000, scoped, tag = 'output window, operand 1, single buffered']
    #allocation18 [shape = 's32[1]{0}', space=sflag, size = 0x4, scoped, tag = 'scoped memory for tpu_custom_call.1']
    %23 = vsyncpa [#allocation3], 0
    %24 = vsyncpa [#allocation6], 0
    %25 = vsyncpa [#allocation9], 0
    %26 = vsyncpa [#allocation12], 0
    %27 = vsyncpa [#allocation15], 0
    %28 = vsyncpa [#allocation4], 0
    %29 = vsyncpa [#allocation18], 0
    // Predicated region
    $region2: #{tpu_custom_call.1} parent=1 // pred_check
      _
    $region3: #{tpu_custom_call.1} parent=1 // pred_check_branch
      %31 = sbr.rel (0) target = $region5
    $region4: #{tpu_custom_call.1} parent=1 // pred_region
      %s33 = ssub.s32 64, 64
      %34 = vsyncadd [#allocation3], %s33
      %s36 = sshll.u32 [#allocation2], 4
      %s37 = int_to_ptr.vmem [resolvable:$true] %s36
      %39 = dma.hbm_to_vmem [thread:$0]  %s0, 64, %s37, [#allocation3]
    $region5: #{tpu_custom_call.1} parent=1 // pred_fallthru
      _
    // Predicated region
    $region6: #{tpu_custom_call.1} parent=1 // pred_check
      _
    $region7: #{tpu_custom_call.1} parent=1 // pred_check_branch
      %41 = sbr.rel (0) target = $region9
    $region8: #{tpu_custom_call.1} parent=1 // pred_region
      %s43 = ssub.s32 64, 64
      %44 = vsyncadd [#allocation6], %s43
      %s46 = sshll.u32 [#allocation5], 4
      %s47 = int_to_ptr.vmem [resolvable:$true] %s46
      %49 = dma.hbm_to_vmem [thread:$0]  %s1, 64, %s47, [#allocation6]
    $region9: #{tpu_custom_call.1} parent=1 // pred_fallthru
      _
    // Predicated region
    $region10: #{tpu_custom_call.1} parent=1 // pred_check
      _
    $region11: #{tpu_custom_call.1} parent=1 // pred_check_branch
      %51 = sbr.rel (0) target = $region13
    $region12: #{tpu_custom_call.1} parent=1 // pred_region
      %s53 = ssub.s32 2048, 2048
      %54 = vsyncadd [#allocation6], %s53
      %s55 = sshll.u32 [#allocation7], 4
      %s56 = int_to_ptr.vmem [resolvable:$true] %s55
      %61 = dma.hbm_to_vmem [thread:$0]  %s2, 2048, %s56, [#allocation6], 128, 128, 8
    $region13: #{tpu_custom_call.1} parent=1 // pred_fallthru
      _
    // Predicated region
    $region14: #{tpu_custom_call.1} parent=1 // pred_check
      _
    $region15: #{tpu_custom_call.1} parent=1 // pred_check_branch
      %63 = sbr.rel (0) target = $region17
    $region16: #{tpu_custom_call.1} parent=1 // pred_region
      _
    $region17: #{tpu_custom_call.1} parent=1 // pred_fallthru
      _
    // Predicated region
    $region18: #{tpu_custom_call.1} parent=1 // pred_check
      _
    $region19: #{tpu_custom_call.1} parent=1 // pred_check_branch
      %65 = sbr.rel (0) target = $region21
    $region20: #{tpu_custom_call.1} parent=1 // pred_region
      _
    $region21: #{tpu_custom_call.1} parent=1 // pred_fallthru
      _
    // Predicated region
    $region22: #{tpu_custom_call.1} parent=1 // pred_check
      _
    $region23: #{tpu_custom_call.1} parent=1 // pred_check_branch
      %67 = sbr.rel (0) target = $region25
    $region24: #{tpu_custom_call.1} parent=1 // pred_region
      %s69 = ssub.s32 1024, 1024
      %70 = vsyncadd [#allocation9], %s69
      %s71 = sshll.u32 [#allocation8], 4
      %s72 = int_to_ptr.vmem [resolvable:$true] %s71
      %77 = dma.hbm_to_vmem [thread:$0]  %s5, 1024, %s72, [#allocation9], 64, 64, 4
    $region25: #{tpu_custom_call.1} parent=1 // pred_fallthru
      _
    // Predicated region
    $region26: #{tpu_custom_call.1} parent=1 // pred_check
      _
    $region27: #{tpu_custom_call.1} parent=1 // pred_check_branch
      %79 = sbr.rel (0) target = $region29
    $region28: #{tpu_custom_call.1} parent=1 // pred_region
      _
    $region29: #{tpu_custom_call.1} parent=1 // pred_fallthru
      _
    // Predicated region
    $region30: #{tpu_custom_call.1} parent=1 // pred_check
      _
    $region31: #{tpu_custom_call.1} parent=1 // pred_check_branch
      %81 = sbr.rel (0) target = $region33
    $region32: #{tpu_custom_call.1} parent=1 // pred_region
      %s83 = ssub.s32 2048, 2048
      %84 = vsyncadd [#allocation9], %s83
      %s85 = sshll.u32 [#allocation10], 4
      %s86 = int_to_ptr.vmem [resolvable:$true] %s85
      %91 = dma.hbm_to_vmem [thread:$0]  %s7, 2048, %s86, [#allocation9], 128, 128, 8
    $region33: #{tpu_custom_call.1} parent=1 // pred_fallthru
      _
    // Predicated region
    $region34: #{tpu_custom_call.1} parent=1 // pred_check
      _
    $region35: #{tpu_custom_call.1} parent=1 // pred_check_branch
      %93 = sbr.rel (0) target = $region37
    $region36: #{tpu_custom_call.1} parent=1 // pred_region
      _
    $region37: #{tpu_custom_call.1} parent=1 // pred_fallthru
      _
    // Predicated region
    $region38: #{tpu_custom_call.1} parent=1 // pred_check
      _
    $region39: #{tpu_custom_call.1} parent=1 // pred_check_branch
      %95 = sbr.rel (0) target = $region41
    $region40: #{tpu_custom_call.1} parent=1 // pred_region
      %s97 = ssub.s32 1024, 1024
      %98 = vsyncadd [#allocation12], %s97
      %s99 = sshll.u32 [#allocation11], 4
      %s100 = int_to_ptr.vmem [resolvable:$true] %s99
      %105 = dma.hbm_to_vmem [thread:$0]  %s9, 1024, %s100, [#allocation12], 64, 64, 4
    $region41: #{tpu_custom_call.1} parent=1 // pred_fallthru
      _
    // Predicated region
    $region42: #{tpu_custom_call.1} parent=1 // pred_check
      _
    $region43: #{tpu_custom_call.1} parent=1 // pred_check_branch
      %107 = sbr.rel (0) target = $region45
    $region44: #{tpu_custom_call.1} parent=1 // pred_region
      _
    $region45: #{tpu_custom_call.1} parent=1 // pred_fallthru
      _
    // Predicated region
    $region46: #{tpu_custom_call.1} parent=1 // pred_check
      _
    $region47: #{tpu_custom_call.1} parent=1 // pred_check_branch
      %109 = sbr.rel (0) target = $region49
    $region48: #{tpu_custom_call.1} parent=1 // pred_region
      _
    $region49: #{tpu_custom_call.1} parent=1 // pred_fallthru
      _
    // Predicated region
    $region50: #{tpu_custom_call.1} parent=1 // pred_check
      _
    $region51: #{tpu_custom_call.1} parent=1 // pred_check_branch
      %111 = sbr.rel (0) target = $region53
    $region52: #{tpu_custom_call.1} parent=1 // pred_region
      %s113 = ssub.s32 1024, 1024
      %114 = vsyncadd [#allocation12], %s113
      %s115 = sshll.u32 [#allocation13], 4
      %s116 = int_to_ptr.vmem [resolvable:$true] %s115
      %121 = dma.hbm_to_vmem [thread:$0]  %s12, 1024, %s116, [#allocation12], 64, 64, 4
    $region53: #{tpu_custom_call.1} parent=1 // pred_fallthru
      _
    // Predicated region
    $region54: #{tpu_custom_call.1} parent=1 // pred_check
      _
    $region55: #{tpu_custom_call.1} parent=1 // pred_check_branch
      %123 = sbr.rel (0) target = $region57
    $region56: #{tpu_custom_call.1} parent=1 // pred_region
      _
    $region57: #{tpu_custom_call.1} parent=1 // pred_fallthru
      _
    // Predicated region
    $region58: #{tpu_custom_call.1} parent=1 // pred_check
      _
    $region59: #{tpu_custom_call.1} parent=1 // pred_check_branch
      %125 = sbr.rel (0) target = $region61
    $region60: #{tpu_custom_call.1} parent=1 // pred_region
      %s127 = ssub.s32 1024, 1024
      %128 = vsyncadd [#allocation15], %s127
      %s129 = sshll.u32 [#allocation14], 4
      %s130 = int_to_ptr.vmem [resolvable:$true] %s129
      %135 = dma.hbm_to_vmem [thread:$0]  %s14, 1024, %s130, [#allocation15], 64, 64, 4
    $region61: #{tpu_custom_call.1} parent=1 // pred_fallthru
      _
    // Predicated region
    $region62: #{tpu_custom_call.1} parent=1 // pred_check
      _
    $region63: #{tpu_custom_call.1} parent=1 // pred_check_branch
      %137 = sbr.rel (0) target = $region65
    $region64: #{tpu_custom_call.1} parent=1 // pred_region
      _
    $region65: #{tpu_custom_call.1} parent=1 // pred_fallthru
      _
    // Predicated region
    $region66: #{tpu_custom_call.1} parent=1 // pred_check
      _
    $region67: #{tpu_custom_call.1} parent=1 // pred_check_branch
      %139 = sbr.rel (0) target = $region69
    $region68: #{tpu_custom_call.1} parent=1 // pred_region
      %140 = dma.done [#allocation3], 64
    $region69: #{tpu_custom_call.1} parent=1 // pred_fallthru
      _
    // Predicated region
    $region70: #{tpu_custom_call.1} parent=1 // pred_check
      _
    $region71: #{tpu_custom_call.1} parent=1 // pred_check_branch
      %142 = sbr.rel (0) target = $region73
    $region72: #{tpu_custom_call.1} parent=1 // pred_region
      %143 = dma.done [#allocation6], 64
    $region73: #{tpu_custom_call.1} parent=1 // pred_fallthru
      _
    // Predicated region
    $region74: #{tpu_custom_call.1} parent=1 // pred_check
      _
    $region75: #{tpu_custom_call.1} parent=1 // pred_check_branch
      %145 = sbr.rel (0) target = $region77
    $region76: #{tpu_custom_call.1} parent=1 // pred_region
      %146 = dma.done [#allocation6], 2048
    $region77: #{tpu_custom_call.1} parent=1 // pred_fallthru
      _
    // Predicated region
    $region78: #{tpu_custom_call.1} parent=1 // pred_check
      _
    $region79: #{tpu_custom_call.1} parent=1 // pred_check_branch
      %148 = sbr.rel (0) target = $region81
    $region80: #{tpu_custom_call.1} parent=1 // pred_region
      %149 = dma.done [#allocation9], 1024
    $region81: #{tpu_custom_call.1} parent=1 // pred_fallthru
      _
    // Predicated region
    $region82: #{tpu_custom_call.1} parent=1 // pred_check
      _
    $region83: #{tpu_custom_call.1} parent=1 // pred_check_branch
      %151 = sbr.rel (0) target = $region85
    $region84: #{tpu_custom_call.1} parent=1 // pred_region
      %152 = dma.done [#allocation9], 2048
    $region85: #{tpu_custom_call.1} parent=1 // pred_fallthru
      _
    // Predicated region
    $region86: #{tpu_custom_call.1} parent=1 // pred_check
      _
    $region87: #{tpu_custom_call.1} parent=1 // pred_check_branch
      %154 = sbr.rel (0) target = $region89
    $region88: #{tpu_custom_call.1} parent=1 // pred_region
      %155 = dma.done [#allocation12], 1024
    $region89: #{tpu_custom_call.1} parent=1 // pred_fallthru
      _
    // Predicated region
    $region90: #{tpu_custom_call.1} parent=1 // pred_check
      _
    $region91: #{tpu_custom_call.1} parent=1 // pred_check_branch
      %157 = sbr.rel (0) target = $region93
    $region92: #{tpu_custom_call.1} parent=1 // pred_region
      %158 = dma.done [#allocation12], 1024
    $region93: #{tpu_custom_call.1} parent=1 // pred_fallthru
      _
    // Predicated region
    $region94: #{tpu_custom_call.1} parent=1 // pred_check
      _
    $region95: #{tpu_custom_call.1} parent=1 // pred_check_branch
      %160 = sbr.rel (0) target = $region97
    $region96: #{tpu_custom_call.1} parent=1 // pred_region
      %161 = dma.done [#allocation15], 1024
    $region97: #{tpu_custom_call.1} parent=1 // pred_fallthru
      _
    %v163 = vld [vmem:[#allocation2] sm:$0xf]
    %v164 = vld [vmem:[#allocation5] sm:$0xf]
    %v165 = vld [vmem:[#allocation7] sm:$0xff]
    %v166 = vld [vmem:[#allocation7 + $0x8] sm:$0xff]
    %v167 = vld [vmem:[#allocation7 + $0x10] sm:$0xff]
    %v168 = vld [vmem:[#allocation7 + $0x18] sm:$0xff]
    %v169 = vld [vmem:[#allocation7 + $0x20] sm:$0xff]
    %v170 = vld [vmem:[#allocation7 + $0x28] sm:$0xff]
    %v171 = vld [vmem:[#allocation7 + $0x30] sm:$0xff]
    %v172 = vld [vmem:[#allocation7 + $0x38] sm:$0xff]
    %v173 = vld [vmem:[#allocation7 + $0x40] sm:$0xff]
    %v174 = vld [vmem:[#allocation7 + $0x48] sm:$0xff]
    %v175 = vld [vmem:[#allocation7 + $0x50] sm:$0xff]
    %v176 = vld [vmem:[#allocation7 + $0x58] sm:$0xff]
    %v177 = vld [vmem:[#allocation7 + $0x60] sm:$0xff]
    %v178 = vld [vmem:[#allocation7 + $0x68] sm:$0xff]
    %v179 = vld [vmem:[#allocation7 + $0x70] sm:$0xff]
    %v180 = vld [vmem:[#allocation7 + $0x78] sm:$0xff]
    %v197 = vunpack.c.l.b16 %v165
    %v198 = vunpack.c.h.b16 %v165
    %v199 = vunpack.c.l.b16 %v166
    %v200 = vunpack.c.h.b16 %v166
    %v201 = vunpack.c.l.b16 %v167
    %v202 = vunpack.c.h.b16 %v167
    %v203 = vunpack.c.l.b16 %v168
    %v204 = vunpack.c.h.b16 %v168
    %v205 = vunpack.c.l.b16 %v169
    %v206 = vunpack.c.h.b16 %v169
    %v207 = vunpack.c.l.b16 %v170
    %v208 = vunpack.c.h.b16 %v170
    %v209 = vunpack.c.l.b16 %v171
    %v210 = vunpack.c.h.b16 %v171
    %v211 = vunpack.c.l.b16 %v172
    %v212 = vunpack.c.h.b16 %v172
    %v213 = vunpack.c.l.b16 %v173
    %v214 = vunpack.c.h.b16 %v173
    %v215 = vunpack.c.l.b16 %v174
    %v216 = vunpack.c.h.b16 %v174
    %v217 = vunpack.c.l.b16 %v175
    %v218 = vunpack.c.h.b16 %v175
    %v219 = vunpack.c.l.b16 %v176
    %v220 = vunpack.c.h.b16 %v176
    %v221 = vunpack.c.l.b16 %v177
    %v222 = vunpack.c.h.b16 %v177
    %v223 = vunpack.c.l.b16 %v178
    %v224 = vunpack.c.h.b16 %v178
    %v225 = vunpack.c.l.b16 %v179
    %v226 = vunpack.c.h.b16 %v179
    %v227 = vunpack.c.l.b16 %v180
    %v228 = vunpack.c.h.b16 %v180
    %v229 = vpack.c.b16 %v199, %v197
    %v230 = vpack.c.b16 %v200, %v198
    %v231 = vpack.c.b16 %v203, %v201
    %v232 = vpack.c.b16 %v204, %v202
    %v233 = vpack.c.b16 %v207, %v205
    %v234 = vpack.c.b16 %v208, %v206
    %v235 = vpack.c.b16 %v211, %v209
    %v236 = vpack.c.b16 %v212, %v210
    %v237 = vpack.c.b16 %v215, %v213
    %v238 = vpack.c.b16 %v216, %v214
    %v239 = vpack.c.b16 %v219, %v217
    %v240 = vpack.c.b16 %v220, %v218
    %v241 = vpack.c.b16 %v223, %v221
    %v242 = vpack.c.b16 %v224, %v222
    %v243 = vpack.c.b16 %v227, %v225
    %v244 = vpack.c.b16 %v228, %v226
    %261 = vmatprep.subr.bf16.mxu0 %v244
    %262 = vmatpush1.bf16.msra.mxu0 %v243
    %263 = vmatprep.subr.bf16.mxu0 %v242
    %264 = vmatpush1.bf16.msra.mxu0 %v241
    %265 = vmatprep.subr.bf16.mxu0 %v240
    %266 = vmatpush1.bf16.msra.mxu0 %v239
    %267 = vmatprep.subr.bf16.mxu0 %v238
    %268 = vmatpush1.bf16.msra.mxu0 %v237
    %269 = vmatprep.subr.bf16.mxu0 %v236
    %270 = vmatpush1.bf16.msra.mxu0 %v235
    %271 = vmatprep.subr.bf16.mxu0 %v234
    %272 = vmatpush1.bf16.msra.mxu0 %v233
    %273 = vmatprep.subr.bf16.mxu0 %v232
    %274 = vmatpush1.bf16.msra.mxu0 %v231
    %275 = vmatprep.subr.bf16.mxu0 %v230
    %276 = vmatpush1.bf16.msra.mxu0 %v229
    %277 = vmatprep.subr.bf16.mxu0 0
    %278 = vmatpush2.bf16.msra.mxu0 0
    %279 = vmatprep.subr.bf16.mxu0 0
    %280 = vmatpush2.bf16.msra.mxu0 0
    %281 = vmatprep.subr.bf16.mxu0 0
    %282 = vmatpush2.bf16.msra.mxu0 0
    %283 = vmatprep.subr.bf16.mxu0 0
    %284 = vmatpush2.bf16.msra.mxu0 0
    %285 = vmatprep.subr.bf16.mxu0 0
    %286 = vmatpush2.bf16.msra.mxu0 0
    %287 = vmatprep.subr.bf16.mxu0 0
    %288 = vmatpush2.bf16.msra.mxu0 0
    %289 = vmatprep.subr.bf16.mxu0 0
    %290 = vmatpush2.bf16.msra.mxu0 0
    %291 = vmatprep.subr.bf16.mxu0 0
    %292 = vmatpush2.bf16.msra.mxu0 0
    %293 = vmatprep.mubr.bf16.mxu0 0
    %294 = vmatmul.mubr.bf16.gmra.mxu0 %v163
    %v295 = vpop.f32.mrf.mxu0
    %v296 = vadd.f32 0.0, %v295
    %v297 = vpop.f32.mrf.mxu0
    %v298 = vadd.f32 0.0, %v297
    %v299 = vpop.f32.mrf.mxu0
    %v300 = vpop.f32.mrf.mxu0
    %301 = vdwg.mxu0
    %v302 = vld [vmem:[%s3] sm:$0xf]
    %vm303 = vcmask 64512
    %v305 = vsel %vm303, %v164, 0
    %vm307 = vcmask 1043456
    %v309 = vsel %vm307, %v302, 0
    %311 = vmatprep.subr.bf16.mxu0 0
    %312 = vmatpush1.bf16.msra.mxu0 0
    %313 = vmatprep.subr.bf16.mxu0 0
    %314 = vmatpush1.bf16.msra.mxu0 0
    %315 = vmatprep.subr.bf16.mxu0 0
    %316 = vmatpush1.bf16.msra.mxu0 0
    %317 = vmatprep.subr.bf16.mxu0 0
    %318 = vmatpush1.bf16.msra.mxu0 0
    %319 = vmatprep.subr.bf16.mxu0 0
    %320 = vmatpush1.bf16.msra.mxu0 0
    %321 = vmatprep.subr.bf16.mxu0 0
    %322 = vmatpush1.bf16.msra.mxu0 0
    %323 = vmatprep.subr.bf16.mxu0 0
    %324 = vmatpush1.bf16.msra.mxu0 0
    %325 = vmatprep.subr.bf16.mxu0 0
    %326 = vmatpush1.bf16.msra.mxu0 %v309
    %327 = vmatprep.subr.bf16.mxu0 0
    %328 = vmatpush2.bf16.msra.mxu0 0
    %329 = vmatprep.subr.bf16.mxu0 0
    %330 = vmatpush2.bf16.msra.mxu0 0
    %331 = vmatprep.subr.bf16.mxu0 0
    %332 = vmatpush2.bf16.msra.mxu0 0
    %333 = vmatprep.subr.bf16.mxu0 0
    %334 = vmatpush2.bf16.msra.mxu0 0
    %335 = vmatprep.subr.bf16.mxu0 0
    %336 = vmatpush2.bf16.msra.mxu0 0
    %337 = vmatprep.subr.bf16.mxu0 0
    %338 = vmatpush2.bf16.msra.mxu0 0
    %339 = vmatprep.subr.bf16.mxu0 0
    %340 = vmatpush2.bf16.msra.mxu0 0
    %341 = vmatprep.subr.bf16.mxu0 0
    %342 = vmatpush2.bf16.msra.mxu0 0
    %343 = vmatprep.mubr.bf16.mxu0 0
    %344 = vmatmul.mubr.bf16.gmra.mxu0 %v305
    %v345 = vpop.f32.mrf.mxu0
    %v346 = vadd.f32 0.0, %v345
    %v347 = vpop.f32.mrf.mxu0
    %v348 = vpop.f32.mrf.mxu0
    %v349 = vpop.f32.mrf.mxu0
    %350 = vdwg.mxu0
    %v351 = vadd.f32 %v296, %v346
    %v352 = vld [vmem:[%s4] sm:$0x1]
    %v354 = vlaneseq
    %v355 = vshrl.u32 %v354, 7
    %v356 = vsub.s32 0, %v355
    %v357 = vrot.slane %v352, %v356
    %v359 = vadd.f32 %v351, %v357
    %v360 = vtanh.pop %v359
    %v361 = vpack.c.bf16 %v360, %v360
    %v362 = vld [vmem:[#allocation8] sm:$0xf]
    %v363 = vld [vmem:[#allocation8 + $0x4] sm:$0xf]
    %v364 = vld [vmem:[#allocation8 + $0x8] sm:$0xf]
    %v365 = vld [vmem:[#allocation8 + $0xc] sm:$0xf]
    %v366 = vld [vmem:[#allocation8 + $0x10] sm:$0xf]
    %v367 = vld [vmem:[#allocation8 + $0x14] sm:$0xf]
    %v368 = vld [vmem:[#allocation8 + $0x18] sm:$0xf]
    %v369 = vld [vmem:[#allocation8 + $0x1c] sm:$0xf]
    %v370 = vld [vmem:[#allocation8 + $0x20] sm:$0xf]
    %v371 = vld [vmem:[#allocation8 + $0x24] sm:$0xf]
    %v372 = vld [vmem:[#allocation8 + $0x28] sm:$0xf]
    %v373 = vld [vmem:[#allocation8 + $0x2c] sm:$0xf]
    %v374 = vld [vmem:[#allocation8 + $0x30] sm:$0xf]
    %v375 = vld [vmem:[#allocation8 + $0x34] sm:$0xf]
    %v376 = vld [vmem:[#allocation8 + $0x38] sm:$0xf]
    %v377 = vld [vmem:[#allocation8 + $0x3c] sm:$0xf]
    %v378 = vld [vmem:[%s6] sm:$0x1]
    %v380 = vlaneseq
    %v381 = vshrl.u32 %v380, 7
    %v382 = vsub.s32 0, %v381
    %v383 = vrot.slane %v378, %v382
    %v401 = vunpack.c.l.b16 %v362
    %v402 = vunpack.c.l.b16 %v363
    %v403 = vunpack.c.l.b16 %v364
    %v404 = vunpack.c.l.b16 %v365
    %v405 = vunpack.c.l.b16 %v366
    %v406 = vunpack.c.l.b16 %v367
    %v407 = vunpack.c.l.b16 %v368
    %v408 = vunpack.c.l.b16 %v369
    %v409 = vunpack.c.l.b16 %v370
    %v410 = vunpack.c.l.b16 %v371
    %v411 = vunpack.c.l.b16 %v372
    %v412 = vunpack.c.l.b16 %v373
    %v413 = vunpack.c.l.b16 %v374
    %v414 = vunpack.c.l.b16 %v375
    %v415 = vunpack.c.l.b16 %v376
    %v416 = vunpack.c.l.b16 %v377
    %v417 = vpack.c.b16 %v402, %v401
    %v418 = vpack.c.b16 %v404, %v403
    %v419 = vpack.c.b16 %v406, %v405
    %v420 = vpack.c.b16 %v408, %v407
    %v421 = vpack.c.b16 %v410, %v409
    %v422 = vpack.c.b16 %v412, %v411
    %v423 = vpack.c.b16 %v414, %v413
    %v424 = vpack.c.b16 %v416, %v415
    %433 = vmatprep.subr.bf16.mxu0 0
    %434 = vmatpush1.bf16.msra.mxu0 %v424
    %435 = vmatprep.subr.bf16.mxu0 0
    %436 = vmatpush1.bf16.msra.mxu0 %v423
    %437 = vmatprep.subr.bf16.mxu0 0
    %438 = vmatpush1.bf16.msra.mxu0 %v422
    %439 = vmatprep.subr.bf16.mxu0 0
    %440 = vmatpush1.bf16.msra.mxu0 %v421
    %441 = vmatprep.subr.bf16.mxu0 0
    %442 = vmatpush1.bf16.msra.mxu0 %v420
    %443 = vmatprep.subr.bf16.mxu0 0
    %444 = vmatpush1.bf16.msra.mxu0 %v419
    %445 = vmatprep.subr.bf16.mxu0 0
    %446 = vmatpush1.bf16.msra.mxu0 %v418
    %447 = vmatprep.subr.bf16.mxu0 0
    %448 = vmatpush1.bf16.msra.mxu0 %v417
    %449 = vmatprep.subr.bf16.mxu0 0
    %450 = vmatpush2.bf16.msra.mxu0 0
    %451 = vmatprep.subr.bf16.mxu0 0
    %452 = vmatpush2.bf16.msra.mxu0 0
    %453 = vmatprep.subr.bf16.mxu0 0
    %454 = vmatpush2.bf16.msra.mxu0 0
    %455 = vmatprep.subr.bf16.mxu0 0
    %456 = vmatpush2.bf16.msra.mxu0 0
    %457 = vmatprep.subr.bf16.mxu0 0
    %458 = vmatpush2.bf16.msra.mxu0 0
    %459 = vmatprep.subr.bf16.mxu0 0
    %460 = vmatpush2.bf16.msra.mxu0 0
    %461 = vmatprep.subr.bf16.mxu0 0
    %462 = vmatpush2.bf16.msra.mxu0 0
    %463 = vmatprep.subr.bf16.mxu0 0
    %464 = vmatpush2.bf16.msra.mxu0 0
    %465 = vmatprep.mubr.bf16.mxu0 0
    %466 = vmatmul.mubr.bf16.gmra.mxu0 %v361
    %v467 = vpop.f32.mrf.mxu0
    %v468 = vadd.f32 %v383, %v467
    %v469 = vpop.f32.mrf.mxu0
    %v470 = vpop.f32.mrf.mxu0
    %v471 = vpop.f32.mrf.mxu0
    %472 = vdwg.mxu0
    %v473 = vtanh.pop %v468
    %v474 = vpack.c.bf16 %v473, %v473
    %v475 = vld [vmem:[#allocation10] sm:$0xff]
    %v476 = vld [vmem:[#allocation10 + $0x8] sm:$0xff]
    %v477 = vld [vmem:[#allocation10 + $0x10] sm:$0xff]
    %v478 = vld [vmem:[#allocation10 + $0x18] sm:$0xff]
    %v479 = vld [vmem:[#allocation10 + $0x20] sm:$0xff]
    %v480 = vld [vmem:[#allocation10 + $0x28] sm:$0xff]
    %v481 = vld [vmem:[#allocation10 + $0x30] sm:$0xff]
    %v482 = vld [vmem:[#allocation10 + $0x38] sm:$0xff]
    %v483 = vld [vmem:[#allocation10 + $0x40] sm:$0xff]
    %v484 = vld [vmem:[#allocation10 + $0x48] sm:$0xff]
    %v485 = vld [vmem:[#allocation10 + $0x50] sm:$0xff]
    %v486 = vld [vmem:[#allocation10 + $0x58] sm:$0xff]
    %v487 = vld [vmem:[#allocation10 + $0x60] sm:$0xff]
    %v488 = vld [vmem:[#allocation10 + $0x68] sm:$0xff]
    %v489 = vld [vmem:[#allocation10 + $0x70] sm:$0xff]
    %v490 = vld [vmem:[#allocation10 + $0x78] sm:$0xff]
    %v507 = vunpack.c.l.b16 %v475
    %v508 = vunpack.c.h.b16 %v475
    %v509 = vunpack.c.l.b16 %v476
    %v510 = vunpack.c.h.b16 %v476
    %v511 = vunpack.c.l.b16 %v477
    %v512 = vunpack.c.h.b16 %v477
    %v513 = vunpack.c.l.b16 %v478
    %v514 = vunpack.c.h.b16 %v478
    %v515 = vunpack.c.l.b16 %v479
    %v516 = vunpack.c.h.b16 %v479
    %v517 = vunpack.c.l.b16 %v480
    %v518 = vunpack.c.h.b16 %v480
    %v519 = vunpack.c.l.b16 %v481
    %v520 = vunpack.c.h.b16 %v481
    %v521 = vunpack.c.l.b16 %v482
    %v522 = vunpack.c.h.b16 %v482
    %v523 = vunpack.c.l.b16 %v483
    %v524 = vunpack.c.h.b16 %v483
    %v525 = vunpack.c.l.b16 %v484
    %v526 = vunpack.c.h.b16 %v484
    %v527 = vunpack.c.l.b16 %v485
    %v528 = vunpack.c.h.b16 %v485
    %v529 = vunpack.c.l.b16 %v486
    %v530 = vunpack.c.h.b16 %v486
    %v531 = vunpack.c.l.b16 %v487
    %v532 = vunpack.c.h.b16 %v487
    %v533 = vunpack.c.l.b16 %v488
    %v534 = vunpack.c.h.b16 %v488
    %v535 = vunpack.c.l.b16 %v489
    %v536 = vunpack.c.h.b16 %v489
    %v537 = vunpack.c.l.b16 %v490
    %v538 = vunpack.c.h.b16 %v490
    %v539 = vpack.c.b16 %v509, %v507
    %v540 = vpack.c.b16 %v510, %v508
    %v541 = vpack.c.b16 %v513, %v511
    %v542 = vpack.c.b16 %v514, %v512
    %v543 = vpack.c.b16 %v517, %v515
    %v544 = vpack.c.b16 %v518, %v516
    %v545 = vpack.c.b16 %v521, %v519
    %v546 = vpack.c.b16 %v522, %v520
    %v547 = vpack.c.b16 %v525, %v523
    %v548 = vpack.c.b16 %v526, %v524
    %v549 = vpack.c.b16 %v529, %v527
    %v550 = vpack.c.b16 %v530, %v528
    %v551 = vpack.c.b16 %v533, %v531
    %v552 = vpack.c.b16 %v534, %v532
    %v553 = vpack.c.b16 %v537, %v535
    %v554 = vpack.c.b16 %v538, %v536
    %571 = vmatprep.subr.bf16.mxu0 %v554
    %572 = vmatpush1.bf16.msra.mxu0 %v553
    %573 = vmatprep.subr.bf16.mxu0 %v552
    %574 = vmatpush1.bf16.msra.mxu0 %v551
    %575 = vmatprep.subr.bf16.mxu0 %v550
    %576 = vmatpush1.bf16.msra.mxu0 %v549
    %577 = vmatprep.subr.bf16.mxu0 %v548
    %578 = vmatpush1.bf16.msra.mxu0 %v547
    %579 = vmatprep.subr.bf16.mxu0 %v546
    %580 = vmatpush1.bf16.msra.mxu0 %v545
    %581 = vmatprep.subr.bf16.mxu0 %v544
    %582 = vmatpush1.bf16.msra.mxu0 %v543
    %583 = vmatprep.subr.bf16.mxu0 %v542
    %584 = vmatpush1.bf16.msra.mxu0 %v541
    %585 = vmatprep.subr.bf16.mxu0 %v540
    %586 = vmatpush1.bf16.msra.mxu0 %v539
    %587 = vmatprep.subr.bf16.mxu0 0
    %588 = vmatpush2.bf16.msra.mxu0 0
    %589 = vmatprep.subr.bf16.mxu0 0
    %590 = vmatpush2.bf16.msra.mxu0 0
    %591 = vmatprep.subr.bf16.mxu0 0
    %592 = vmatpush2.bf16.msra.mxu0 0
    %593 = vmatprep.subr.bf16.mxu0 0
    %594 = vmatpush2.bf16.msra.mxu0 0
    %595 = vmatprep.subr.bf16.mxu0 0
    %596 = vmatpush2.bf16.msra.mxu0 0
    %597 = vmatprep.subr.bf16.mxu0 0
    %598 = vmatpush2.bf16.msra.mxu0 0
    %599 = vmatprep.subr.bf16.mxu0 0
    %600 = vmatpush2.bf16.msra.mxu0 0
    %601 = vmatprep.subr.bf16.mxu0 0
    %602 = vmatpush2.bf16.msra.mxu0 0
    %603 = vmatprep.mubr.bf16.mxu0 0
    %604 = vmatmul.mubr.bf16.gmra.mxu0 %v474
    %v605 = vpop.f32.mrf.mxu0
    %v606 = vadd.f32 0.0, %v605
    %v607 = vpop.f32.mrf.mxu0
    %v608 = vadd.f32 0.0, %v607
    %v609 = vpop.f32.mrf.mxu0
    %v610 = vpop.f32.mrf.mxu0
    %611 = vdwg.mxu0
    %v612 = vld [vmem:[%s8] sm:$0x1]
    %v614 = vlaneseq
    %v615 = vshrl.u32 %v614, 7
    %v616 = vsub.s32 0, %v615
    %v617 = vrot.slane %v612, %v616
    %v619 = vadd.f32 %v606, %v617
    %v620 = vtanh.pop %v619
    %v621 = vpack.c.bf16 %v620, %v620
    %v622 = vld [vmem:[#allocation11] sm:$0xf]
    %v623 = vld [vmem:[#allocation11 + $0x4] sm:$0xf]
    %v624 = vld [vmem:[#allocation11 + $0x8] sm:$0xf]
    %v625 = vld [vmem:[#allocation11 + $0xc] sm:$0xf]
    %v626 = vld [vmem:[#allocation11 + $0x10] sm:$0xf]
    %v627 = vld [vmem:[#allocation11 + $0x14] sm:$0xf]
    %v628 = vld [vmem:[#allocation11 + $0x18] sm:$0xf]
    %v629 = vld [vmem:[#allocation11 + $0x1c] sm:$0xf]
    %v630 = vld [vmem:[#allocation11 + $0x20] sm:$0xf]
    %v631 = vld [vmem:[#allocation11 + $0x24] sm:$0xf]
    %v632 = vld [vmem:[#allocation11 + $0x28] sm:$0xf]
    %v633 = vld [vmem:[#allocation11 + $0x2c] sm:$0xf]
    %v634 = vld [vmem:[#allocation11 + $0x30] sm:$0xf]
    %v635 = vld [vmem:[#allocation11 + $0x34] sm:$0xf]
    %v636 = vld [vmem:[#allocation11 + $0x38] sm:$0xf]
    %v637 = vld [vmem:[#allocation11 + $0x3c] sm:$0xf]
    %v638 = vld [vmem:[%s10] sm:$0x1]
    %v640 = vlaneseq
    %v641 = vshrl.u32 %v640, 7
    %v642 = vsub.s32 0, %v641
    %v643 = vrot.slane %v638, %v642
    %v661 = vunpack.c.l.b16 %v622
    %v662 = vunpack.c.l.b16 %v623
    %v663 = vunpack.c.l.b16 %v624
    %v664 = vunpack.c.l.b16 %v625
    %v665 = vunpack.c.l.b16 %v626
    %v666 = vunpack.c.l.b16 %v627
    %v667 = vunpack.c.l.b16 %v628
    %v668 = vunpack.c.l.b16 %v629
    %v669 = vunpack.c.l.b16 %v630
    %v670 = vunpack.c.l.b16 %v631
    %v671 = vunpack.c.l.b16 %v632
    %v672 = vunpack.c.l.b16 %v633
    %v673 = vunpack.c.l.b16 %v634
    %v674 = vunpack.c.l.b16 %v635
    %v675 = vunpack.c.l.b16 %v636
    %v676 = vunpack.c.l.b16 %v637
    %v677 = vpack.c.b16 %v662, %v661
    %v678 = vpack.c.b16 %v664, %v663
    %v679 = vpack.c.b16 %v666, %v665
    %v680 = vpack.c.b16 %v668, %v667
    %v681 = vpack.c.b16 %v670, %v669
    %v682 = vpack.c.b16 %v672, %v671
    %v683 = vpack.c.b16 %v674, %v673
    %v684 = vpack.c.b16 %v676, %v675
    %693 = vmatprep.subr.bf16.mxu0 0
    %694 = vmatpush1.bf16.msra.mxu0 %v684
    %695 = vmatprep.subr.bf16.mxu0 0
    %696 = vmatpush1.bf16.msra.mxu0 %v683
    %697 = vmatprep.subr.bf16.mxu0 0
    %698 = vmatpush1.bf16.msra.mxu0 %v682
    %699 = vmatprep.subr.bf16.mxu0 0
    %700 = vmatpush1.bf16.msra.mxu0 %v681
    %701 = vmatprep.subr.bf16.mxu0 0
    %702 = vmatpush1.bf16.msra.mxu0 %v680
    %703 = vmatprep.subr.bf16.mxu0 0
    %704 = vmatpush1.bf16.msra.mxu0 %v679
    %705 = vmatprep.subr.bf16.mxu0 0
    %706 = vmatpush1.bf16.msra.mxu0 %v678
    %707 = vmatprep.subr.bf16.mxu0 0
    %708 = vmatpush1.bf16.msra.mxu0 %v677
    %709 = vmatprep.subr.bf16.mxu0 0
    %710 = vmatpush2.bf16.msra.mxu0 0
    %711 = vmatprep.subr.bf16.mxu0 0
    %712 = vmatpush2.bf16.msra.mxu0 0
    %713 = vmatprep.subr.bf16.mxu0 0
    %714 = vmatpush2.bf16.msra.mxu0 0
    %715 = vmatprep.subr.bf16.mxu0 0
    %716 = vmatpush2.bf16.msra.mxu0 0
    %717 = vmatprep.subr.bf16.mxu0 0
    %718 = vmatpush2.bf16.msra.mxu0 0
    %719 = vmatprep.subr.bf16.mxu0 0
    %720 = vmatpush2.bf16.msra.mxu0 0
    %721 = vmatprep.subr.bf16.mxu0 0
    %722 = vmatpush2.bf16.msra.mxu0 0
    %723 = vmatprep.subr.bf16.mxu0 0
    %724 = vmatpush2.bf16.msra.mxu0 0
    %725 = vmatprep.mubr.bf16.mxu0 0
    %726 = vmatmul.mubr.bf16.gmra.mxu0 %v621
    %v727 = vpop.f32.mrf.mxu0
    %v728 = vadd.f32 %v643, %v727
    %v729 = vpop.f32.mrf.mxu0
    %v730 = vpop.f32.mrf.mxu0
    %v731 = vpop.f32.mrf.mxu0
    %732 = vdwg.mxu0
    %733 = vst [vmem:[#allocation17] sm:$0xff] %v728
    %v734 = vadd.f32 %v298, %v608
    %v735 = vld [vmem:[%s11] sm:$0x1]
    %v737 = vlaneseq
    %v738 = vshrl.u32 %v737, 7
    %v739 = vsub.s32 0, %v738
    %v740 = vrot.slane %v735, %v739
    %v742 = vadd.f32 %v734, %v740
    %v743 = vtanh.pop %v742
    %v744 = vpack.c.bf16 %v743, %v743
    %v745 = vld [vmem:[#allocation13] sm:$0xf]
    %v746 = vld [vmem:[#allocation13 + $0x4] sm:$0xf]
    %v747 = vld [vmem:[#allocation13 + $0x8] sm:$0xf]
    %v748 = vld [vmem:[#allocation13 + $0xc] sm:$0xf]
    %v749 = vld [vmem:[#allocation13 + $0x10] sm:$0xf]
    %v750 = vld [vmem:[#allocation13 + $0x14] sm:$0xf]
    %v751 = vld [vmem:[#allocation13 + $0x18] sm:$0xf]
    %v752 = vld [vmem:[#allocation13 + $0x1c] sm:$0xf]
    %v753 = vld [vmem:[#allocation13 + $0x20] sm:$0xf]
    %v754 = vld [vmem:[#allocation13 + $0x24] sm:$0xf]
    %v755 = vld [vmem:[#allocation13 + $0x28] sm:$0xf]
    %v756 = vld [vmem:[#allocation13 + $0x2c] sm:$0xf]
    %v757 = vld [vmem:[#allocation13 + $0x30] sm:$0xf]
    %v758 = vld [vmem:[#allocation13 + $0x34] sm:$0xf]
    %v759 = vld [vmem:[#allocation13 + $0x38] sm:$0xf]
    %v760 = vld [vmem:[#allocation13 + $0x3c] sm:$0xf]
    %v761 = vld [vmem:[%s13] sm:$0x1]
    %v763 = vlaneseq
    %v764 = vshrl.u32 %v763, 7
    %v765 = vsub.s32 0, %v764
    %v766 = vrot.slane %v761, %v765
    %v784 = vunpack.c.l.b16 %v745
    %v785 = vunpack.c.l.b16 %v746
    %v786 = vunpack.c.l.b16 %v747
    %v787 = vunpack.c.l.b16 %v748
    %v788 = vunpack.c.l.b16 %v749
    %v789 = vunpack.c.l.b16 %v750
    %v790 = vunpack.c.l.b16 %v751
    %v791 = vunpack.c.l.b16 %v752
    %v792 = vunpack.c.l.b16 %v753
    %v793 = vunpack.c.l.b16 %v754
    %v794 = vunpack.c.l.b16 %v755
    %v795 = vunpack.c.l.b16 %v756
    %v796 = vunpack.c.l.b16 %v757
    %v797 = vunpack.c.l.b16 %v758
    %v798 = vunpack.c.l.b16 %v759
    %v799 = vunpack.c.l.b16 %v760
    %v800 = vpack.c.b16 %v785, %v784
    %v801 = vpack.c.b16 %v787, %v786
    %v802 = vpack.c.b16 %v789, %v788
    %v803 = vpack.c.b16 %v791, %v790
    %v804 = vpack.c.b16 %v793, %v792
    %v805 = vpack.c.b16 %v795, %v794
    %v806 = vpack.c.b16 %v797, %v796
    %v807 = vpack.c.b16 %v799, %v798
    %816 = vmatprep.subr.bf16.mxu0 0
    %817 = vmatpush1.bf16.msra.mxu0 %v807
    %818 = vmatprep.subr.bf16.mxu0 0
    %819 = vmatpush1.bf16.msra.mxu0 %v806
    %820 = vmatprep.subr.bf16.mxu0 0
    %821 = vmatpush1.bf16.msra.mxu0 %v805
    %822 = vmatprep.subr.bf16.mxu0 0
    %823 = vmatpush1.bf16.msra.mxu0 %v804
    %824 = vmatprep.subr.bf16.mxu0 0
    %825 = vmatpush1.bf16.msra.mxu0 %v803
    %826 = vmatprep.subr.bf16.mxu0 0
    %827 = vmatpush1.bf16.msra.mxu0 %v802
    %828 = vmatprep.subr.bf16.mxu0 0
    %829 = vmatpush1.bf16.msra.mxu0 %v801
    %830 = vmatprep.subr.bf16.mxu0 0
    %831 = vmatpush1.bf16.msra.mxu0 %v800
    %832 = vmatprep.subr.bf16.mxu0 0
    %833 = vmatpush2.bf16.msra.mxu0 0
    %834 = vmatprep.subr.bf16.mxu0 0
    %835 = vmatpush2.bf16.msra.mxu0 0
    %836 = vmatprep.subr.bf16.mxu0 0
    %837 = vmatpush2.bf16.msra.mxu0 0
    %838 = vmatprep.subr.bf16.mxu0 0
    %839 = vmatpush2.bf16.msra.mxu0 0
    %840 = vmatprep.subr.bf16.mxu0 0
    %841 = vmatpush2.bf16.msra.mxu0 0
    %842 = vmatprep.subr.bf16.mxu0 0
    %843 = vmatpush2.bf16.msra.mxu0 0
    %844 = vmatprep.subr.bf16.mxu0 0
    %845 = vmatpush2.bf16.msra.mxu0 0
    %846 = vmatprep.subr.bf16.mxu0 0
    %847 = vmatpush2.bf16.msra.mxu0 0
    %848 = vmatprep.mubr.bf16.mxu0 0
    %849 = vmatmul.mubr.bf16.gmra.mxu0 %v744
    %v850 = vpop.f32.mrf.mxu0
    %v851 = vadd.f32 %v766, %v850
    %v852 = vpop.f32.mrf.mxu0
    %v853 = vpop.f32.mrf.mxu0
    %v854 = vpop.f32.mrf.mxu0
    %855 = vdwg.mxu0
    %v856 = vtanh.pop %v851
    %v857 = vpack.c.bf16 %v856, %v856
    %v858 = vld [vmem:[#allocation14] sm:$0xf]
    %v859 = vld [vmem:[#allocation14 + $0x4] sm:$0xf]
    %v860 = vld [vmem:[#allocation14 + $0x8] sm:$0xf]
    %v861 = vld [vmem:[#allocation14 + $0xc] sm:$0xf]
    %v862 = vld [vmem:[#allocation14 + $0x10] sm:$0xf]
    %v863 = vld [vmem:[#allocation14 + $0x14] sm:$0xf]
    %v864 = vld [vmem:[#allocation14 + $0x18] sm:$0xf]
    %v865 = vld [vmem:[#allocation14 + $0x1c] sm:$0xf]
    %v866 = vld [vmem:[#allocation14 + $0x20] sm:$0xf]
    %v867 = vld [vmem:[#allocation14 + $0x24] sm:$0xf]
    %v868 = vld [vmem:[#allocation14 + $0x28] sm:$0xf]
    %v869 = vld [vmem:[#allocation14 + $0x2c] sm:$0xf]
    %v870 = vld [vmem:[#allocation14 + $0x30] sm:$0xf]
    %v871 = vld [vmem:[#allocation14 + $0x34] sm:$0xf]
    %v872 = vld [vmem:[#allocation14 + $0x38] sm:$0xf]
    %v873 = vld [vmem:[#allocation14 + $0x3c] sm:$0xf]
    %v874 = vld [vmem:[%s15] sm:$0x1]
    %v876 = vlaneseq
    %v877 = vshrl.u32 %v876, 7
    %v878 = vsub.s32 0, %v877
    %v879 = vrot.slane %v874, %v878
    %v897 = vunpack.c.l.b16 %v858
    %v898 = vunpack.c.l.b16 %v859
    %v899 = vunpack.c.l.b16 %v860
    %v900 = vunpack.c.l.b16 %v861
    %v901 = vunpack.c.l.b16 %v862
    %v902 = vunpack.c.l.b16 %v863
    %v903 = vunpack.c.l.b16 %v864
    %v904 = vunpack.c.l.b16 %v865
    %v905 = vunpack.c.l.b16 %v866
    %v906 = vunpack.c.l.b16 %v867
    %v907 = vunpack.c.l.b16 %v868
    %v908 = vunpack.c.l.b16 %v869
    %v909 = vunpack.c.l.b16 %v870
    %v910 = vunpack.c.l.b16 %v871
    %v911 = vunpack.c.l.b16 %v872
    %v912 = vunpack.c.l.b16 %v873
    %v913 = vpack.c.b16 %v898, %v897
    %v914 = vpack.c.b16 %v900, %v899
    %v915 = vpack.c.b16 %v902, %v901
    %v916 = vpack.c.b16 %v904, %v903
    %v917 = vpack.c.b16 %v906, %v905
    %v918 = vpack.c.b16 %v908, %v907
    %v919 = vpack.c.b16 %v910, %v909
    %v920 = vpack.c.b16 %v912, %v911
    %929 = vmatprep.subr.bf16.mxu0 0
    %930 = vmatpush1.bf16.msra.mxu0 %v920
    %931 = vmatprep.subr.bf16.mxu0 0
    %932 = vmatpush1.bf16.msra.mxu0 %v919
    %933 = vmatprep.subr.bf16.mxu0 0
    %934 = vmatpush1.bf16.msra.mxu0 %v918
    %935 = vmatprep.subr.bf16.mxu0 0
    %936 = vmatpush1.bf16.msra.mxu0 %v917
    %937 = vmatprep.subr.bf16.mxu0 0
    %938 = vmatpush1.bf16.msra.mxu0 %v916
    %939 = vmatprep.subr.bf16.mxu0 0
    %940 = vmatpush1.bf16.msra.mxu0 %v915
    %941 = vmatprep.subr.bf16.mxu0 0
    %942 = vmatpush1.bf16.msra.mxu0 %v914
    %943 = vmatprep.subr.bf16.mxu0 0
    %944 = vmatpush1.bf16.msra.mxu0 %v913
    %945 = vmatprep.subr.bf16.mxu0 0
    %946 = vmatpush2.bf16.msra.mxu0 0
    %947 = vmatprep.subr.bf16.mxu0 0
    %948 = vmatpush2.bf16.msra.mxu0 0
    %949 = vmatprep.subr.bf16.mxu0 0
    %950 = vmatpush2.bf16.msra.mxu0 0
    %951 = vmatprep.subr.bf16.mxu0 0
    %952 = vmatpush2.bf16.msra.mxu0 0
    %953 = vmatprep.subr.bf16.mxu0 0
    %954 = vmatpush2.bf16.msra.mxu0 0
    %955 = vmatprep.subr.bf16.mxu0 0
    %956 = vmatpush2.bf16.msra.mxu0 0
    %957 = vmatprep.subr.bf16.mxu0 0
    %958 = vmatpush2.bf16.msra.mxu0 0
    %959 = vmatprep.subr.bf16.mxu0 0
    %960 = vmatpush2.bf16.msra.mxu0 0
    %961 = vmatprep.mubr.bf16.mxu0 0
    %962 = vmatmul.mubr.bf16.gmra.mxu0 %v857
    %v963 = vpop.f32.mrf.mxu0
    %v964 = vadd.f32 %v879, %v963
    %v965 = vpop.f32.mrf.mxu0
    %v966 = vpop.f32.mrf.mxu0
    %v967 = vpop.f32.mrf.mxu0
    %968 = vdwg.mxu0
    %969 = vst [vmem:[#allocation16] sm:$0xff] %v964
    // Predicated region
    $region98: #{tpu_custom_call.1} parent=1 // pred_check
      _
    $region99: #{tpu_custom_call.1} parent=1 // pred_check_branch
      %971 = sbr.rel (0) target = $region101
    $region100: #{tpu_custom_call.1} parent=1 // pred_region
      %s973 = ssub.s32 128, 128
      %974 = vsyncadd [#allocation4], %s973
      %s976 = sshll.u32 [#allocation16], 4
      %s977 = int_to_ptr.vmem [resolvable:$true] %s976
      %979 = dma.vmem_to_hbm [thread:$0]  %s977, 128, %s16, [#allocation4]
    $region101: #{tpu_custom_call.1} parent=1 // pred_fallthru
      _
    // Predicated region
    $region102: #{tpu_custom_call.1} parent=1 // pred_check
      _
    $region103: #{tpu_custom_call.1} parent=1 // pred_check_branch
      %981 = sbr.rel (0) target = $region105
    $region104: #{tpu_custom_call.1} parent=1 // pred_region
      %s983 = ssub.s32 128, 128
      %984 = vsyncadd [#allocation18], %s983
      %s986 = sshll.u32 [#allocation17], 4
      %s987 = int_to_ptr.vmem [resolvable:$true] %s986
      %989 = dma.vmem_to_hbm [thread:$0]  %s987, 128, %s17, [#allocation18]
    $region105: #{tpu_custom_call.1} parent=1 // pred_fallthru
      _
    // Predicated region
    $region106: #{tpu_custom_call.1} parent=1 // pred_check
      _
    $region107: #{tpu_custom_call.1} parent=1 // pred_check_branch
      %991 = sbr.rel (0) target = $region109
    $region108: #{tpu_custom_call.1} parent=1 // pred_region
      %992 = dma.done [#allocation4], 128
    $region109: #{tpu_custom_call.1} parent=1 // pred_fallthru
      _
    // Predicated region
    $region110: #{tpu_custom_call.1} parent=1 // pred_check
      _
    $region111: #{tpu_custom_call.1} parent=1 // pred_check_branch
      %994 = sbr.rel (0) target = $region113
    $region112: #{tpu_custom_call.1} parent=1 // pred_region
      %995 = dma.done [#allocation18], 128
    $region113: #{tpu_custom_call.1} parent=1 // pred_fallthru
      _
    %996 = vsyncpa [#allocation3], 1
    %997 = vsyncpa [#allocation6], 1
    %998 = vsyncpa [#allocation9], 1
    %999 = vsyncpa [#allocation12], 1
    %1000 = vsyncpa [#allocation15], 1
    %1001 = vsyncpa [#allocation4], 1
    %1002 = vsyncpa [#allocation18], 1

</llo_original>
